<compile_context>
chip_gen: v6e
topology: v6e:2x2x1
jax: 0.10.0
libtpu: 0.0.40
codegen_flags: <defaults>
</compile_context>

<pallas_src>
import jax
import jax.numpy as jnp
from jax.experimental import pallas as pl
from jax.experimental.pallas import tpu as pltpu

IN_F = 10
HID_F = 10
OUT_F = 10


def _round_up(v, m):
    return -(-v // m) * m


def _mlp_kernel(wft_ref, bf_ref, x_ref, o_ref):
    # y = x @ W_f^T + b_f    (batch on sublanes, features on lanes; K = 10)
    y = jnp.dot(x_ref[...], wft_ref[...], preferred_element_type=jnp.float32)
    o_ref[...] = (y + bf_ref[...]).astype(o_ref.dtype)


def test_mlp_forward(x, w1, b1, w2, b2, *, batch_tile=16384):
    """x: (B, 10) f32. w*: (10, 10) (PyTorch (out, in) layout). b*: (10,).

    Returns (B, 10), matching linear_2(linear_1(x)).
    """
    B = x.shape[0]

    # --- Fold the two affine layers (no nonlinearity in between): exact in
    #     real arithmetic, f32 rounding only. ---
    wft = (w2 @ w1).T                          # (IN_F, OUT_F) = W_f^T
    bf = (w2 @ b1 + b2).reshape(1, OUT_F)      # (1, OUT_F)

    # --- Tile selection.  Batch lives on the sublane axis -> multiple of 8.
    max_tile = max(8, _round_up(int(batch_tile), 8))
    if B <= 8:
        tb = B                                 # single full-extent block
    elif B <= 2 * max_tile:
        # Split into >= 2 grid steps so both v7x TensorCores get work.
        tb = min(max_tile, _round_up(pl.cdiv(B, 2), 8))
    else:
        tb = max_tile

    grid = (pl.cdiv(B, tb),)                   # ragged last block is clipped

    # VMEM working set: (tb, 10) f32 lane-pads to (tb, 128) -> 512*tb bytes per
    # buffer; double-buffered input + output = 2048*tb.  Cap below v7x's
    # 64 MiB physical VMEM; always allow at least the 16 MiB scoped default.
    vmem_bytes = int(min(48 << 20, max(16 << 20, 2048 * tb + (4 << 20))))

    return pl.pallas_call(
        _mlp_kernel,
        out_shape=jax.ShapeDtypeStruct((B, OUT_F), x.dtype),
        grid_spec=pltpu.PrefetchScalarGridSpec(
            num_scalar_prefetch=0,
            grid=grid,
            in_specs=[
                # Folded weight / bias: constant index_map -> resident in VMEM
                # across all grid steps.
                pl.BlockSpec((IN_F, OUT_F), lambda i: (0, 0)),
                pl.BlockSpec((1, OUT_F), lambda i: (0, 0)),
                # x tile: (tb, 10), batch tiled along sublanes, natural layout.
                pl.BlockSpec((tb, IN_F), lambda i: (i, 0)),
            ],
            out_specs=pl.BlockSpec((tb, OUT_F), lambda i: (i, 0)),
        ),
        compiler_params=pltpu.CompilerParams(
            dimension_semantics=("parallel",),
            vmem_limit_bytes=vmem_bytes,
        ),
    )(wft, bf, x)


def _reference(x, w1, b1, w2, b2):
    h = x @ w1.T + b1
    return h @ w2.T + b2


if __name__ == "__main__":
    key = jax.random.PRNGKey(0)
    k_x, k_w1, k_b1, k_w2, k_b2 = jax.random.split(key, 5)

    # Deterministic parameter init (mimics Linear's uniform(-1/sqrt(in), 1/sqrt(in))).
    bound = 1.0 / (IN_F ** 0.5)
    w1 = jax.random.uniform(k_w1, (HID_F, IN_F), jnp.float32, -bound, bound)
    b1 = jax.random.uniform(k_b1, (HID_F,), jnp.float32, -bound, bound)
    w2 = jax.random.uniform(k_w2, (OUT_F, HID_F), jnp.float32, -bound, bound)
    b2 = jax.random.uniform(k_b2, (OUT_F,), jnp.float32, -bound, bound)

    # Case 1: small batch -> tb = 8, two grid steps (exercises the >=2-step split).
    B1 = 16
    x1 = jax.random.normal(k_x, (B1, IN_F), dtype=jnp.float32)
    out1 = jax.block_until_ready(test_mlp_forward(x1, w1, b1, w2, b2))
    ref1 = _reference(x1, w1, b1, w2, b2)
    assert out1.shape == (B1, OUT_F), out1.shape
    assert jnp.allclose(out1, ref1, atol=3e-5, rtol=1e-5), "mismatch (small batch)"

    # Case 2: batch larger than 2*tile with a non-multiple-of-8 user tile
    # (rounded up to 64) -> 4 grid steps, ragged last block clipped by Pallas.
    B2 = 200
    x2 = jax.random.normal(jax.random.fold_in(k_x, 1), (B2, IN_F), dtype=jnp.float32)
    out2 = jax.block_until_ready(
        test_mlp_forward(x2, w1, b1, w2, b2, batch_tile=60))
    ref2 = _reference(x2, w1, b1, w2, b2)
    assert out2.shape == (B2, OUT_F), out2.shape
    assert jnp.allclose(out2, ref2, atol=3e-5, rtol=1e-5), "mismatch (ragged tiled batch)"

    print("KERNEL_OK")
</pallas_src>

<mosaic_0001>
module attributes {stable_mosaic.version = 11 : i64} {
  func.func @_mlp_kernel(%arg0: i32, %arg1: memref<10x10xf32, #tpu.memory_space<vmem>>, %arg2: memref<1x10xf32, #tpu.memory_space<vmem>>, %arg3: memref<8x10xf32, #tpu.memory_space<vmem>>, %arg4: memref<8x10xf32, #tpu.memory_space<vmem>>) attributes {dimension_semantics = [#tpu.dimension_semantics<parallel>], iteration_bounds = array<i64: 2>, scalar_prefetch = 0 : i64, scratch_operands = 0 : i64, tpu.core_type = #tpu.core_type<tc>, window_params = [{pipeline_mode = #tpu.pipeline_mode<synchronous>, transform_indices = @transform_0, window_bounds = array<i64: 10, 10>}, {pipeline_mode = #tpu.pipeline_mode<synchronous>, transform_indices = @transform_1, window_bounds = array<i64: 1, 10>}, {transform_indices = @transform_2, window_bounds = array<i64: 8, 10>}, {transform_indices = @transform_3, window_bounds = array<i64: 8, 10>}]} {
    %c0 = arith.constant 0 : index
    %c0_0 = arith.constant 0 : index
    %0 = vector.load %arg3[%c0, %c0_0] : memref<8x10xf32, #tpu.memory_space<vmem>>, vector<8x10xf32>
    %c0_1 = arith.constant 0 : index
    %c0_2 = arith.constant 0 : index
    %1 = vector.load %arg1[%c0_1, %c0_2] : memref<10x10xf32, #tpu.memory_space<vmem>>, vector<10x10xf32>
    %cst = arith.constant dense<0.000000e+00> : vector<8x10xf32>
    %2 = tpu.matmul %0, %1, %cst {dimension_numbers = #tpu.dot_dimension_numbers<[1], [0], [0], [1], [0, 0, 1, 1], [], []>} : vector<8x10xf32>, vector<10x10xf32>, vector<8x10xf32> -> vector<8x10xf32>
    %c0_3 = arith.constant 0 : index
    %c0_4 = arith.constant 0 : index
    %3 = vector.load %arg2[%c0_3, %c0_4] : memref<1x10xf32, #tpu.memory_space<vmem>>, vector<1x10xf32>
    %4 = vector.broadcast %3 : vector<1x10xf32> to vector<8x10xf32>
    %5 = arith.addf %2, %4 : vector<8x10xf32>
    %c0_5 = arith.constant 0 : index
    %c0_6 = arith.constant 0 : index
    %6 = vector.load %arg4[%c0_5, %c0_6] : memref<8x10xf32, #tpu.memory_space<vmem>>, vector<8x10xf32>
    tpu.vector_store %arg4[%c0_5, %c0_6], %5 {strides = array<i32>} : memref<8x10xf32, #tpu.memory_space<vmem>>, vector<8x10xf32>,
    return
  }
  func.func @transform_0(%arg0: i32) -> (i32, i32) {
    %c0_i32 = arith.constant 0 : i32
    %c0_i32_0 = arith.constant 0 : i32
    %c0_i32_1 = arith.constant 0 : i32
    return %c0_i32, %c0_i32_0 : i32, i32
  }
  func.func @transform_1(%arg0: i32) -> (i32, i32) {
    %c0_i32 = arith.constant 0 : i32
    %c0_i32_0 = arith.constant 0 : i32
    %c0_i32_1 = arith.constant 0 : i32
    return %c0_i32, %c0_i32_0 : i32, i32
  }
  func.func @transform_2(%arg0: i32) -> (i32, i32) {
    %c0_i32 = arith.constant 0 : i32
    %c0_i32_0 = arith.constant 0 : i32
    return %arg0, %c0_i32 : i32, i32
  }
  func.func @transform_3(%arg0: i32) -> (i32, i32) {
    %c0_i32 = arith.constant 0 : i32
    %c0_i32_0 = arith.constant 0 : i32
    return %arg0, %c0_i32 : i32, i32
  }
}

</mosaic_0001>

<llo_original>
// kernel: tpu_custom_call.1
$region0: #{tpu_custom_call.1}
  #allocation0 [shape = 'u32[]', space=smem, size = 0x4, offset = 0x4, fixed_abs, tag = 'smem constant byte address 0x4 - core index']
  #allocation1 [shape = 'u32[144,128]{1,0:T(1,128)}', space=vmem, size = 0x12000, scoped, tag = 'internal scratch']
  %s0 = inlined_call_operand.hbm [shape: f32[10,10], index: 0, kind: input, shape index: {}]
  %s1 = inlined_call_operand.vmem [shape: f32[1,10], index: 1, kind: input, shape index: {}]
  %s2 = inlined_call_operand.hbm [shape: f32[16,10], index: 2, kind: input, shape index: {}]
  %s3 = inlined_call_operand.hbm [shape: f32[16,10], index: 3, kind: output, shape index: {}]
  %s4 = sld [smem:[#allocation0]]
  $region53: #{tpu_custom_call.1} parent=0
    _
  %s6 = ssub.s32 1, %s4
  %s7 = scalar_select 0, %s6, %s4
  $region1: #{tpu_custom_call.1} parent=0
    #allocation2 [shape = 'u8[8192]{0}', space=vmem, size = 0x2000, scoped, tag = 'input window, operand 0, single buffered']
    #allocation3 [shape = 's32[2]{0}', space=sflag, size = 0x8, scoped, tag = 'scoped memory for tpu_custom_call.1']
    #allocation4 [shape = 's32[2]{0}', space=sflag, size = 0x8, scoped, tag = 'scoped memory for tpu_custom_call.1']
    #allocation5 [shape = 'u8[8192]{0}', space=vmem, size = 0x2000, scoped, tag = 'input window, operand 2']
    #allocation6 [shape = 's32[2]{0}', space=sflag, size = 0x8, scoped, tag = 'scoped memory for tpu_custom_call.1']
    #allocation7 [shape = 'u8[8192]{0}', space=vmem, size = 0x2000, scoped, tag = 'output window, operand 0']
    %8 = vsyncpa [#allocation3], 0
    %9 = vsyncpa [#allocation6], 0
    %s10 = scalar_lea.sflag [#allocation6], 1
    %11 = vsyncpa %s10, 0
    %12 = vsyncpa [#allocation4], 0
    %s13 = scalar_lea.sflag [#allocation4], 1
    %14 = vsyncpa %s13, 0
    loop: start=0, step=1, limit=4
    $region2: #{tpu_custom_call.1} parent=1 // loop_pre_header
      _
    $region3: #{tpu_custom_call.1} parent=1 // loop_header
      %s16 = sphi 0, %s20
      %p17 = scmp.ge.s32.totalorder %s16, 4
      %s24 = sphi 0, %s24
      %s26 = sphi 0, %s24
      %s27 = sphi 0, %s26
      %s41 = sphi 0, %s27
      %s45 = sphi 0, %s45
      %s47 = sphi 0, %s45
      %s48 = sphi 0, %s47
      %s62 = sphi 0, %s48
      %s68 = sphi 0, %s70
      %s71 = sphi 0, %s68
      %s72 = sphi 0, %s71
      %s88 = sphi 0, %s72
      %s94 = sphi 0, %s96
      %s97 = sphi 0, %s94
      %s98 = sphi 0, %s97
      %s114 = sphi 0, %s98
    $region4: #{tpu_custom_call.1} parent=1 // loop_header_branch
      %19 = sbr.rel (%p17) target = $region8
    $region5: #{tpu_custom_call.1} parent=1 // loop_body
      %s21 = ssub.s32 %s16, 1
      %s22 = ssub.s32 %s16, 2
      %s23 = sadd.s32 %s16, 1
      %s25 = sadd.s32 %s24, 1
      %p28 = scmp.eq.s32.totalorder %s16, 1
      %p29 = scmp.ne.s32.totalorder %s24, %s26
      %p30 = scmp.eq.s32.totalorder %s16, 0
      %p31 = por %p29, %p30
      %p32 = scmp.ne.s32.totalorder %s24, %s26
      %p33 = scmp.eq.s32.totalorder %s21, 1
      %p34 = por %p32, %p33
      %p35 = scmp.ne.s32.totalorder %s26, %s27
      %p36 = scmp.eq.s32.totalorder %s21, 0
      %p37 = por %p35, %p36
      %p38 = scmp.ne.s32.totalorder %s26, %s27
      %p39 = scmp.eq.s32.totalorder %s22, 1
      %p40 = por %p38, %p39
      %p42 = scmp.ne.s32.totalorder %s27, %s41
      %p43 = scmp.eq.s32.totalorder %s22, 0
      %p44 = por %p42, %p43
      %s46 = sadd.s32 %s45, 1
      %p49 = scmp.eq.s32.totalorder %s16, 1
      %p50 = scmp.ne.s32.totalorder %s45, %s47
      %p51 = scmp.eq.s32.totalorder %s16, 0
      %p52 = por %p50, %p51
      %p53 = scmp.ne.s32.totalorder %s45, %s47
      %p54 = scmp.eq.s32.totalorder %s21, 1
      %p55 = por %p53, %p54
      %p56 = scmp.ne.s32.totalorder %s47, %s48
      %p57 = scmp.eq.s32.totalorder %s21, 0
      %p58 = por %p56, %p57
      %p59 = scmp.ne.s32.totalorder %s47, %s48
      %p60 = scmp.eq.s32.totalorder %s22, 1
      %p61 = por %p59, %p60
      %p63 = scmp.ne.s32.totalorder %s48, %s62
      %p64 = scmp.eq.s32.totalorder %s22, 0
      %p65 = por %p63, %p64
      %s66 = ssub.s32 %s16, %s23
      %p67 = scmp.eq.s32.totalorder %s66, 0
      %s69 = sadd.s32 %s68, 1
      %s70 = scalar_select %p67, %s68, %s69
      %p73 = pneg %p67
      %p74 = scmp.eq.s32.totalorder %s16, 1
      %p75 = por %p73, %p74
      %p76 = scmp.ne.s32.totalorder %s68, %s71
      %p77 = scmp.eq.s32.totalorder %s16, 0
      %p78 = por %p76, %p77
      %p79 = scmp.ne.s32.totalorder %s68, %s71
      %p80 = scmp.eq.s32.totalorder %s21, 1
      %p81 = por %p79, %p80
      %p82 = scmp.ne.s32.totalorder %s71, %s72
      %p83 = scmp.eq.s32.totalorder %s21, 0
      %p84 = por %p82, %p83
      %p85 = scmp.ne.s32.totalorder %s71, %s72
      %p86 = scmp.eq.s32.totalorder %s22, 1
      %p87 = por %p85, %p86
      %p89 = scmp.ne.s32.totalorder %s72, %s88
      %p90 = scmp.eq.s32.totalorder %s22, 0
      %p91 = por %p89, %p90
      %s92 = ssub.s32 %s16, %s23
      %p93 = scmp.eq.s32.totalorder %s92, 0
      %s95 = sadd.s32 %s94, 1
      %s96 = scalar_select %p93, %s94, %s95
      %p99 = pneg %p93
      %p100 = scmp.eq.s32.totalorder %s16, 1
      %p101 = por %p99, %p100
      %p102 = scmp.ne.s32.totalorder %s94, %s97
      %p103 = scmp.eq.s32.totalorder %s16, 0
      %p104 = por %p102, %p103
      %p105 = scmp.ne.s32.totalorder %s94, %s97
      %p106 = scmp.eq.s32.totalorder %s21, 1
      %p107 = por %p105, %p106
      %p108 = scmp.ne.s32.totalorder %s97, %s98
      %p109 = scmp.eq.s32.totalorder %s21, 0
      %p110 = por %p108, %p109
      %p111 = scmp.ne.s32.totalorder %s97, %s98
      %p112 = scmp.eq.s32.totalorder %s22, 1
      %p113 = por %p111, %p112
      %p115 = scmp.ne.s32.totalorder %s98, %s114
      %p116 = scmp.eq.s32.totalorder %s22, 0
      %p117 = por %p115, %p116
      %p118 = scmp.le.s32.totalorder 1, %s16
      %p119 = scmp.lt.s32.totalorder %s16, 3
      %p120 = pnand %p118, %p119
      %p121 = pneg %p120
      // Predicated region
      $region9: #{tpu_custom_call.1} parent=5 // pred_check
        _
      $region10: #{tpu_custom_call.1} parent=5 // pred_check_branch
        %123 = sbr.rel (%p120) target = $region12
      $region11: #{tpu_custom_call.1} parent=5 // pred_region
        %s124 = ssub.s32 %s16, 1
        // Predicated region
        $region13: #{tpu_custom_call.1} parent=11 // pred_check
          %p125 = pneg %p37
        $region14: #{tpu_custom_call.1} parent=11 // pred_check_branch
          %127 = sbr.rel (%p125) target = $region16
        $region15: #{tpu_custom_call.1} parent=11 // pred_region
          %s129 = ssub.s32 256, 256
          %130 = vsyncadd [#allocation3], %s129
          %s131 = sshll.u32 [#allocation2], 4
          %s132 = int_to_ptr.vmem [resolvable:$true] %s131
          %137 = dma.hbm_to_vmem [thread:$0]  %s0, 256, %s132, [#allocation3], 128, 128, 8
        $region16: #{tpu_custom_call.1} parent=11 // pred_fallthru
          _
        // Predicated region
        $region17: #{tpu_custom_call.1} parent=11 // pred_check
          %p138 = pneg %p58
        $region18: #{tpu_custom_call.1} parent=11 // pred_check_branch
          %140 = sbr.rel (%p138) target = $region20
        $region19: #{tpu_custom_call.1} parent=11 // pred_region
          _
        $region20: #{tpu_custom_call.1} parent=11 // pred_fallthru
          _
      $region12: #{tpu_custom_call.1} parent=5 // pred_fallthru
        _
      %p141 = scmp.lt.s32.totalorder %s16, 2
      // Predicated region
      $region21: #{tpu_custom_call.1} parent=5 // pred_check
        %p142 = pneg %p141
      $region22: #{tpu_custom_call.1} parent=5 // pred_check_branch
        %144 = sbr.rel (%p142) target = $region24
      $region23: #{tpu_custom_call.1} parent=5 // pred_region
        // Predicated region
        $region25: #{tpu_custom_call.1} parent=23 // pred_check
          %p145 = pneg %p78
        $region26: #{tpu_custom_call.1} parent=23 // pred_check_branch
          %147 = sbr.rel (%p145) target = $region28
        $region27: #{tpu_custom_call.1} parent=23 // pred_region
          %s148 = sand.u32 %s68, 1
          %s149 = scalar_lea.sflag [#allocation6], %s148
          %s150 = sand.u32 %s68, 1
          %s151 = smul.addr %s150, 8
          %s152 = scalar_lea.vmem [#allocation5], %s151
          %s154 = ssub.s32 128, 128
          %155 = vsyncadd %s149, %s154
          %s156 = smul.addr %s16, 128
          %s157 = scalar_lea.hbm %s2, %s156
          %s159 = sshll.u32 %s152, 4
          %s160 = int_to_ptr.vmem [resolvable:$true] %s159
          %162 = dma.hbm_to_vmem [thread:$0]  %s157, 128, %s160, %s149
        $region28: #{tpu_custom_call.1} parent=23 // pred_fallthru
          _
      $region24: #{tpu_custom_call.1} parent=5 // pred_fallthru
        _
      %p163 = scmp.le.s32.totalorder 1, %s16
      %p164 = scmp.lt.s32.totalorder %s16, 3
      %p165 = pnand %p163, %p164
      %p166 = pneg %p165
      // Predicated region
      $region29: #{tpu_custom_call.1} parent=5 // pred_check
        _
      $region30: #{tpu_custom_call.1} parent=5 // pred_check_branch
        %168 = sbr.rel (%p165) target = $region32
      $region31: #{tpu_custom_call.1} parent=5 // pred_region
        %s169 = ssub.s32 %s16, 1
        // Predicated region
        $region33: #{tpu_custom_call.1} parent=31 // pred_check
          %p170 = pneg %p37
        $region34: #{tpu_custom_call.1} parent=31 // pred_check_branch
          %172 = sbr.rel (%p170) target = $region36
        $region35: #{tpu_custom_call.1} parent=31 // pred_region
          %173 = dma.done [#allocation3], 256
        $region36: #{tpu_custom_call.1} parent=31 // pred_fallthru
          _
        %s174 = sand.u32 %s71, 1
        %s175 = scalar_lea.sflag [#allocation6], %s174
        %s176 = sand.u32 %s71, 1
        %s177 = smul.addr %s176, 8
        %s178 = scalar_lea.vmem [#allocation5], %s177
        // Predicated region
        $region37: #{tpu_custom_call.1} parent=31 // pred_check
          %p179 = pneg %p84
        $region38: #{tpu_custom_call.1} parent=31 // pred_check_branch
          %181 = sbr.rel (%p179) target = $region40
        $region39: #{tpu_custom_call.1} parent=31 // pred_region
          %182 = dma.done %s175, 128
        $region40: #{tpu_custom_call.1} parent=31 // pred_fallthru
          _
        %p183 = pneg %p37
        %p184 = pneg %p34
        %p185 = pneg %p58
        %p186 = pneg %p55
        %s187 = sand.u32 %s71, 1
        %s188 = scalar_lea.sflag [#allocation6], %s187
        %s189 = sand.u32 %s71, 1
        %s190 = smul.addr %s189, 8
        %s191 = scalar_lea.vmem [#allocation5], %s190
        %p192 = pneg %p84
        %p193 = pneg %p81
        %p194 = pneg %p110
        %p195 = pneg %p107
        %s196 = sand.u32 %s97, 1
        %s197 = scalar_lea.sflag [#allocation4], %s196
        %s198 = sand.u32 %s97, 1
        %s199 = smul.addr %s198, 8
        %s200 = scalar_lea.vmem [#allocation7], %s199
        %v201 = vld [vmem:[%s178] sm:$0xff]
        %v202 = vld [vmem:[#allocation2] sm:$0xff]
        %v203 = vld [vmem:[#allocation2 + $0x8] sm:$0x3]
        %v204 = vld [vmem:[%s1] sm:$0x1]
        %v206 = vlaneseq
        %v207 = vshrl.u32 %v206, 7
        %v208 = vsub.s32 0, %v207
        %v209 = vrot.slane %v204, %v208
        %vm211 = vcmask 80896
        %v213 = vsel %vm211, %v201, 0
        %vm215 = vcmask 1041408
        %v217 = vsel %vm215, %v203, 0
        %219 = vmatprep.subr.mxu0 0.0
        %220 = vmatpush1.msra.mxu0 0.0
        %221 = vmatprep.subr.mxu0 0.0
        %222 = vmatpush1.msra.mxu0 0.0
        %223 = vmatprep.subr.mxu0 0.0
        %224 = vmatpush1.msra.mxu0 0.0
        %225 = vmatprep.subr.mxu0 0.0
        %226 = vmatpush1.msra.mxu0 0.0
        %227 = vmatprep.subr.mxu0 0.0
        %228 = vmatpush1.msra.mxu0 0.0
        %229 = vmatprep.subr.mxu0 0.0
        %230 = vmatpush1.msra.mxu0 0.0
        %231 = vmatprep.subr.mxu0 0.0
        %232 = vmatpush1.msra.mxu0 0.0
        %233 = vmatprep.subr.mxu0 0.0
        %234 = vmatpush1.msra.mxu0 0.0
        %235 = vmatprep.subr.mxu0 0.0
        %236 = vmatpush1.msra.mxu0 0.0
        %237 = vmatprep.subr.mxu0 0.0
        %238 = vmatpush1.msra.mxu0 0.0
        %239 = vmatprep.subr.mxu0 0.0
        %240 = vmatpush1.msra.mxu0 0.0
        %241 = vmatprep.subr.mxu0 0.0
        %242 = vmatpush1.msra.mxu0 0.0
        %243 = vmatprep.subr.mxu0 0.0
        %244 = vmatpush1.msra.mxu0 0.0
        %245 = vmatprep.subr.mxu0 0.0
        %246 = vmatpush1.msra.mxu0 0.0
        %247 = vmatprep.subr.mxu0 0.0
        %248 = vmatpush1.msra.mxu0 %v217
        %249 = vmatprep.subr.mxu0 0.0
        %250 = vmatpush1.msra.mxu0 %v202
        %251 = vmatprep.subr.mxu0 0.0
        %252 = vmatpush2.msra.mxu0 0.0
        %253 = vmatprep.subr.mxu0 0.0
        %254 = vmatpush2.msra.mxu0 0.0
        %255 = vmatprep.subr.mxu0 0.0
        %256 = vmatpush2.msra.mxu0 0.0
        %257 = vmatprep.subr.mxu0 0.0
        %258 = vmatpush2.msra.mxu0 0.0
        %259 = vmatprep.subr.mxu0 0.0
        %260 = vmatpush2.msra.mxu0 0.0
        %261 = vmatprep.subr.mxu0 0.0
        %262 = vmatpush2.msra.mxu0 0.0
        %263 = vmatprep.subr.mxu0 0.0
        %264 = vmatpush2.msra.mxu0 0.0
        %265 = vmatprep.subr.mxu0 0.0
        %266 = vmatpush2.msra.mxu0 0.0
        %267 = vmatprep.subr.mxu0 0.0
        %268 = vmatpush2.msra.mxu0 0.0
        %269 = vmatprep.subr.mxu0 0.0
        %270 = vmatpush2.msra.mxu0 0.0
        %271 = vmatprep.subr.mxu0 0.0
        %272 = vmatpush2.msra.mxu0 0.0
        %273 = vmatprep.subr.mxu0 0.0
        %274 = vmatpush2.msra.mxu0 0.0
        %275 = vmatprep.subr.mxu0 0.0
        %276 = vmatpush2.msra.mxu0 0.0
        %277 = vmatprep.subr.mxu0 0.0
        %278 = vmatpush2.msra.mxu0 0.0
        %279 = vmatprep.subr.mxu0 0.0
        %280 = vmatpush2.msra.mxu0 0.0
        %281 = vmatprep.subr.mxu0 0.0
        %282 = vmatpush2.msra.mxu0 0.0
        %283 = vmatprep.mubr.f32.mxu0 0.0
        %284 = vmatmul.mubr.f32.gmra.mxu0 %v213
        %v285 = vpop.f32.mrf.mxu0
        %v286 = vadd.f32 %v209, %v285
        %v287 = vpop.f32.mrf.mxu0
        %288 = vdwg.mxu0
        %289 = vst.msk [vmem:[%s200] sm:$0xff] %vm211, %v286
        %s290 = sand.u32 %s97, 1
        %s291 = scalar_lea.sflag [#allocation4], %s290
        %s292 = sand.u32 %s97, 1
        %s293 = smul.addr %s292, 8
        %s294 = scalar_lea.vmem [#allocation7], %s293
        // Predicated region
        $region41: #{tpu_custom_call.1} parent=31 // pred_check
          %p295 = pneg %p107
        $region42: #{tpu_custom_call.1} parent=31 // pred_check_branch
          %297 = sbr.rel (%p295) target = $region44
        $region43: #{tpu_custom_call.1} parent=31 // pred_region
          %s299 = ssub.s32 128, 128
          %300 = vsyncadd %s291, %s299
          %s301 = smul.addr %s21, 128
          %s302 = scalar_lea.hbm %s3, %s301
          %s304 = sshll.u32 %s294, 4
          %s305 = int_to_ptr.vmem [resolvable:$true] %s304
          %307 = dma.vmem_to_hbm [thread:$0]  %s305, 128, %s302, %s291
        $region44: #{tpu_custom_call.1} parent=31 // pred_fallthru
          _
      $region32: #{tpu_custom_call.1} parent=5 // pred_fallthru
        _
      %p308 = scmp.le.s32.totalorder 2, %s16
      // Predicated region
      $region45: #{tpu_custom_call.1} parent=5 // pred_check
        %p309 = pneg %p308
      $region46: #{tpu_custom_call.1} parent=5 // pred_check_branch
        %311 = sbr.rel (%p309) target = $region48
      $region47: #{tpu_custom_call.1} parent=5 // pred_region
        %s312 = ssub.s32 %s16, 2
        // Predicated region
        $region49: #{tpu_custom_call.1} parent=47 // pred_check
          %p313 = pneg %p113
        $region50: #{tpu_custom_call.1} parent=47 // pred_check_branch
          %315 = sbr.rel (%p313) target = $region52
        $region51: #{tpu_custom_call.1} parent=47 // pred_region
          %s316 = sand.u32 %s98, 1
          %s317 = scalar_lea.sflag [#allocation4], %s316
          %s318 = sand.u32 %s98, 1
          %s319 = smul.addr %s318, 8
          %s320 = scalar_lea.vmem [#allocation7], %s319
          %321 = dma.done %s317, 128
        $region52: #{tpu_custom_call.1} parent=47 // pred_fallthru
          _
      $region48: #{tpu_custom_call.1} parent=5 // pred_fallthru
        _
    $region6: #{tpu_custom_call.1} parent=1 // loop_footer
      %s20 = sadd.s32 1, %s16
    $region7: #{tpu_custom_call.1} parent=1 // loop_footer_branch
      %15 = sbr.rel target = $region3
    $region8: #{tpu_custom_call.1} parent=1 // loop_exit
      _
    %322 = vsyncpa [#allocation3], 1
    %s323 = scalar_lea.sflag [#allocation3], 1
    %324 = vsyncpa %s323, 1
    %325 = vsyncpa [#allocation6], 1
    %s326 = scalar_lea.sflag [#allocation6], 1
    %327 = vsyncpa %s326, 1
    %328 = vsyncpa [#allocation4], 1
    %s329 = scalar_lea.sflag [#allocation4], 1
    %330 = vsyncpa %s329, 1

</llo_original>
